<compile_context>
chip_gen: v5e
topology: v5e:2x2
jax: 0.10.0
libtpu: 0.0.40
codegen_flags: <defaults>
</compile_context>

<pallas_src>
import functools

import jax
import jax.numpy as jnp
from jax.experimental import pallas as pl
from jax.experimental.pallas import tpu as pltpu


_VMEM_LIMIT_BYTES = 48 * 1024 * 1024     # safe on v7x (64 MiB phys), > v5e/v6e scoped defaults
_STREAM_BUDGET_BYTES = 16 * 1024 * 1024  # budget for double-buffered in/out blocks + f32 temps
_MAX_ROW_TILE = 1024                     # memory-bound kernel: big tiles amortize per-step overhead


def _num_tensorcores():
    """2 TensorCores per chip on v7x, 1 on v5e/v6e."""
    try:
        kind = jax.devices()[0].device_kind.lower()
    except Exception:
        return 1
    return 2 if ("v7" in kind or "7x" in kind) else 1


_NUM_TC = _num_tensorcores()
# Single-TC chips: the grid is a serial loop, 2 steps is enough to overlap DMA.
# v7x megacore: keep the parallel axis long enough to feed both TensorCores.
_MIN_GRID_STEPS = 8 if _NUM_TC >= 2 else 2


def _compiler_params(dimension_semantics):
    return pltpu.CompilerParams(
        dimension_semantics=dimension_semantics,
        vmem_limit_bytes=_VMEM_LIMIT_BYTES,
    )


def _sublane_align(dtype):
    """Sublane packing: 8 rows for f32, 16 for bf16, 32 for int8/fp8."""
    return 8 * max(1, 4 // jnp.dtype(dtype).itemsize)


def _fit_tile(extent, align, stream_bytes, work_bytes, *, budget, max_units, min_grid):
    """Pick a tile along one axis.

    `stream_bytes` per unit is double-buffered (in + out pipeline buffers);
    `work_bytes` per unit covers in-kernel f32 temporaries (single-buffered).
    Largest multiple of `align` (capped at `max_units`) fitting `budget`,
    shrunk so the grid keeps >= `min_grid` steps when the extent allows it.
    """
    # TODO(synk): fall back to a lane-tiled two-pass kernel when a single
    # align-row slab exceeds the VMEM budget (only hit for C in the millions).
    per_unit = 2 * stream_bytes + work_bytes
    fit = max(1, int(budget // per_unit))
    tile = min(max_units, fit)
    tile = max(align, (tile // align) * align)
    if extent >= align * min_grid:
        tile = min(tile, max(align, (extent // min_grid) // align * align))
    if tile >= extent:
        return extent
    return tile


def _balance_even_steps(extent, tile, align):
    """On 2-TC chips, nudge the tile so the parallel grid has an even step count."""
    if _NUM_TC < 2 or tile <= 0 or tile >= extent:
        return tile
    steps = pl.cdiv(extent, tile)
    if steps % 2 == 0:
        return tile
    cand = max(align, pl.cdiv(pl.cdiv(extent, steps + 1), align) * align)
    if cand < extent and pl.cdiv(extent, cand) % 2 == 0:
        return cand
    return tile


def _pick_group(R, C, *, min_lanes=128, max_lanes=512):
    """Smallest G with G*C >= min_lanes, G*C <= max_lanes and R % G == 0."""
    if C >= min_lanes:
        return None
    g_lo = -(-min_lanes // C)
    g_hi = max_lanes // C
    for g in range(g_lo, g_hi + 1):
        if R % g == 0:
            return g
    return None


# ----------------------------------------------------------------------------
# Kernels (single statistics pass: sum, sum-of-squares -> mean, var)
# ----------------------------------------------------------------------------

def _ln_lane_kernel(x_ref, w_ref, b_ref, o_ref, *, eps, inv_c):
    """channels_last, C on lanes.  x_ref: (T, C); w/b: (1, C)."""
    x = x_ref[...].astype(jnp.float32)
    s1 = jnp.sum(x, axis=-1, keepdims=True)
    s2 = jnp.sum(x * x, axis=-1, keepdims=True)
    mean = s1 * inv_c
    var = jnp.maximum(s2 * inv_c - mean * mean, 0.0)
    inv = jax.lax.rsqrt(var + eps)
    w = w_ref[...].astype(jnp.float32)
    b = b_ref[...].astype(jnp.float32)
    o_ref[...] = ((x - mean) * (inv * w) + b).astype(o_ref.dtype)


def _ln_grouped_kernel(x_ref, w_ref, b_ref, m01_ref, mb_ref, o_ref, *, eps, inv_c):
    """channels_last, small C folded into lanes (minimal G).

    x_ref: (T, G*C) with lane index = g*C + c.  m01: (G*C, G) pure 0/1 reduce
    mask; mb: (G, G*C) pure 0/1 broadcast mask.  The 1/C scaling is a scalar
    VPU multiply on the tiny (T, G) intermediates; mask matmuls run at
    Precision.HIGH (bf16_3x) which is exact enough with a 0/1 operand.
    """
    prec = jax.lax.Precision.HIGH
    x = x_ref[...].astype(jnp.float32)
    m01 = m01_ref[...]
    mb = mb_ref[...]
    s1 = jnp.dot(x, m01, precision=prec)          # (T, G) group sums
    s2 = jnp.dot(x * x, m01, precision=prec)      # (T, G) group sums of squares
    mean_g = s1 * inv_c
    var_g = jnp.maximum(s2 * inv_c - mean_g * mean_g, 0.0)
    inv_g = jax.lax.rsqrt(var_g + eps)
    mean = jnp.dot(mean_g, mb, precision=prec)    # broadcast back to (T, G*C)
    inv = jnp.dot(inv_g, mb, precision=prec)
    w = w_ref[...].astype(jnp.float32)
    b = b_ref[...].astype(jnp.float32)
    o_ref[...] = ((x - mean) * (inv * w) + b).astype(o_ref.dtype)


def _ln_sublane_kernel(x_ref, w_ref, b_ref, o_ref, *, eps, inv_c):
    """channels_first, C on sublanes, spatial on lanes.  x_ref: (C, T); w/b: (C, 1)."""
    x = x_ref[...].astype(jnp.float32)
    s1 = jnp.sum(x, axis=0, keepdims=True)
    s2 = jnp.sum(x * x, axis=0, keepdims=True)
    mean = s1 * inv_c
    var = jnp.maximum(s2 * inv_c - mean * mean, 0.0)
    inv = jax.lax.rsqrt(var + eps)
    w = w_ref[...].astype(jnp.float32)
    b = b_ref[...].astype(jnp.float32)
    o_ref[...] = ((x - mean) * (inv * w) + b).astype(o_ref.dtype)


# ----------------------------------------------------------------------------
# Wrappers
# ----------------------------------------------------------------------------

def _ln_channels_last_wide(x2d, weight, bias, eps):
    """x2d: (R, C) with C on lanes (C >= 128, or no legal lane folding)."""
    R, C = x2d.shape
    itemsize = x2d.dtype.itemsize
    align = _sublane_align(x2d.dtype)
    stream = C * 2 * itemsize        # in + out bytes per row (double-buffered)
    work = 3 * C * 4                 # f32 temporaries per row
    tile = _fit_tile(R, align, stream, work, budget=_STREAM_BUDGET_BYTES,
                     max_units=_MAX_ROW_TILE, min_grid=_MIN_GRID_STEPS)
    tile = _balance_even_steps(R, tile, align)
    grid = (pl.cdiv(R, tile),)
    kernel = functools.partial(_ln_lane_kernel, eps=float(eps), inv_c=1.0 / C)
    return pl.pallas_call(
        kernel,
        out_shape=jax.ShapeDtypeStruct((R, C), x2d.dtype),
        grid_spec=pltpu.PrefetchScalarGridSpec(
            num_scalar_prefetch=0,
            grid=grid,
            in_specs=[
                pl.BlockSpec((tile, C), lambda i: (i, 0)),
                pl.BlockSpec((1, C), lambda i: (0, 0)),
                pl.BlockSpec((1, C), lambda i: (0, 0)),
            ],
            out_specs=pl.BlockSpec((tile, C), lambda i: (i, 0)),
        ),
        compiler_params=_compiler_params(("parallel",)),
    )(x2d,
      weight.reshape(1, C).astype(jnp.float32),
      bias.reshape(1, C).astype(jnp.float32))


def _ln_channels_last_grouped(x2d, weight, bias, eps, G):
    """x2d: (R, G*C): each slab row holds G independent rows of C channels."""
    R, GC = x2d.shape
    C = GC // G
    itemsize = x2d.dtype.itemsize
    align = _sublane_align(x2d.dtype)

    grp = jnp.arange(GC, dtype=jnp.int32) // C
    gid = jnp.arange(G, dtype=jnp.int32)
    m01 = (grp[:, None] == gid[None, :]).astype(jnp.float32)    # (GC, G) 0/1 reduce mask
    m_bc = (gid[:, None] == grp[None, :]).astype(jnp.float32)   # (G, GC) 0/1 broadcast mask
    w_t = jnp.tile(weight.reshape(-1).astype(jnp.float32), G).reshape(1, GC)
    b_t = jnp.tile(bias.reshape(-1).astype(jnp.float32), G).reshape(1, GC)

    stream = GC * 2 * itemsize
    work = 3 * GC * 4
    tile = _fit_tile(R, align, stream, work, budget=_STREAM_BUDGET_BYTES,
                     max_units=_MAX_ROW_TILE, min_grid=_MIN_GRID_STEPS)
    tile = _balance_even_steps(R, tile, align)
    grid = (pl.cdiv(R, tile),)
    kernel = functools.partial(_ln_grouped_kernel, eps=float(eps), inv_c=1.0 / C)
    return pl.pallas_call(
        kernel,
        out_shape=jax.ShapeDtypeStruct((R, GC), x2d.dtype),
        grid_spec=pltpu.PrefetchScalarGridSpec(
            num_scalar_prefetch=0,
            grid=grid,
            in_specs=[
                pl.BlockSpec((tile, GC), lambda i: (i, 0)),
                pl.BlockSpec((1, GC), lambda i: (0, 0)),
                pl.BlockSpec((1, GC), lambda i: (0, 0)),
                pl.BlockSpec((GC, G), lambda i: (0, 0)),
                pl.BlockSpec((G, GC), lambda i: (0, 0)),
            ],
            out_specs=pl.BlockSpec((tile, GC), lambda i: (i, 0)),
        ),
        compiler_params=_compiler_params(("parallel",)),
    )(x2d, w_t, b_t, m01, m_bc)


def _ln_channels_first(x, weight, bias, eps):
    """x: (N, C, *spatial) NCHW-style.  Normalize over C with no HBM transpose."""
    N, C = x.shape[0], x.shape[1]
    spatial = 1
    for d in x.shape[2:]:
        spatial *= d
    x3 = x.reshape(N, C, spatial)
    itemsize = x.dtype.itemsize

    stream = C * 2 * itemsize        # in + out bytes per spatial column
    work = C * 3 * 4                 # f32 temporaries per column
    min_grid = max(1, -(-_MIN_GRID_STEPS // max(N, 1)))
    # No artificial lane cap: size the block purely from the VMEM byte budget
    # so small-C blocks are multi-MiB and per-step overhead is amortized.
    tile = _fit_tile(spatial, 128, stream, work, budget=_STREAM_BUDGET_BYTES,
                     max_units=max(spatial, 128), min_grid=min_grid)
    grid = (N, pl.cdiv(spatial, tile))
    kernel = functools.partial(_ln_sublane_kernel, eps=float(eps), inv_c=1.0 / C)
    out = pl.pallas_call(
        kernel,
        out_shape=jax.ShapeDtypeStruct((N, C, spatial), x.dtype),
        grid_spec=pltpu.PrefetchScalarGridSpec(
            num_scalar_prefetch=0,
            grid=grid,
            in_specs=[
                pl.BlockSpec((None, C, tile), lambda n, j: (n, 0, j)),
                pl.BlockSpec((C, 1), lambda n, j: (0, 0)),
                pl.BlockSpec((C, 1), lambda n, j: (0, 0)),
            ],
            out_specs=pl.BlockSpec((None, C, tile), lambda n, j: (n, 0, j)),
        ),
        compiler_params=_compiler_params(("parallel", "parallel")),
    )(x3,
      weight.reshape(C, 1).astype(jnp.float32),
      bias.reshape(C, 1).astype(jnp.float32))
    return out.reshape(x.shape)


def layer_norm(x, weight, bias, eps=1e-6, data_format="channels_last"):
    """Pallas LayerNorm matching the PyTorch module.

    channels_last : x shape (..., C); normalize over the last dim.
    channels_first: x shape (N, C, H, W); normalize over dim 1.
    """
    if data_format not in ("channels_last", "channels_first"):
        raise NotImplementedError
    weight = jnp.asarray(weight)
    bias = jnp.asarray(bias)

    if data_format == "channels_first":
        return _ln_channels_first(x, weight, bias, eps)

    C = x.shape[-1]
    x2d = x.reshape(-1, C)
    R = x2d.shape[0]

    if C < 128:
        # Lane-fold rows (contiguous, free reshape) with the SMALLEST G that
        # makes the lane axis >= 128 so stores are lane-dense and the grouped
        # MXU reduce stays cheap.
        G = _pick_group(R, C)
        if G is not None and G > 1:
            out = _ln_channels_last_grouped(x2d.reshape(R // G, G * C),
                                            weight, bias, eps, G)
            return out.reshape(x.shape)

    out = _ln_channels_last_wide(x2d, weight, bias, eps)
    return out.reshape(x.shape)


# ----------------------------------------------------------------------------
# Reference + test
# ----------------------------------------------------------------------------

def _ref_layer_norm(x, weight, bias, eps, data_format):
    if data_format == "channels_last":
        u = jnp.mean(x, axis=-1, keepdims=True)
        s = jnp.mean((x - u) ** 2, axis=-1, keepdims=True)
        return (x - u) / jnp.sqrt(s + eps) * weight + bias
    else:
        u = jnp.mean(x, axis=1, keepdims=True)
        s = jnp.mean((x - u) ** 2, axis=1, keepdims=True)
        xn = (x - u) / jnp.sqrt(s + eps)
        return weight[None, :, None, None] * xn + bias[None, :, None, None]


if __name__ == "__main__":
    key = jax.random.PRNGKey(0)
    keys = jax.random.split(key, 7)

    # -------- channels_first (NCHW, conv path) --------
    N, C, H, W = 2, 4, 16, 16
    x_cf = jax.random.normal(keys[0], (N, C, H, W), dtype=jnp.float32)
    weight = jax.random.normal(keys[1], (C,), dtype=jnp.float32)
    bias = jax.random.normal(keys[2], (C,), dtype=jnp.float32)

    out_cf = jax.block_until_ready(
        layer_norm(x_cf, weight, bias, eps=1e-6, data_format="channels_first"))
    ref_cf = _ref_layer_norm(x_cf, weight, bias, 1e-6, "channels_first")
    assert out_cf.shape == x_cf.shape
    assert jnp.max(jnp.abs(out_cf - ref_cf)) < 1e-4

    # -------- channels_last, small C (lane-folded grouped path, minimal G) --------
    x_cl = jax.random.normal(keys[3], (N, H, W, C), dtype=jnp.float32)
    out_cl = jax.block_until_ready(
        layer_norm(x_cl, weight, bias, eps=1e-6, data_format="channels_last"))
    ref_cl = _ref_layer_norm(x_cl, weight, bias, 1e-6, "channels_last")
    assert out_cl.shape == x_cl.shape
    assert jnp.max(jnp.abs(out_cl - ref_cl)) < 1e-4

    # -------- channels_last, small C, bf16 input (dtype-aware tiling) --------
    x_bf = x_cl.astype(jnp.bfloat16)
    out_bf = jax.block_until_ready(
        layer_norm(x_bf, weight, bias, eps=1e-6, data_format="channels_last"))
    ref_bf = _ref_layer_norm(x_bf.astype(jnp.float32), weight, bias, 1e-6,
                             "channels_last")
    assert out_bf.dtype == jnp.bfloat16
    assert jnp.max(jnp.abs(out_bf.astype(jnp.float32) - ref_bf)) < 1e-1

    # -------- channels_last, wide C (standard lane-reduce path) --------
    Cw = 128
    x_w = jax.random.normal(keys[4], (2, 8, 8, Cw), dtype=jnp.float32)
    w_w = jax.random.normal(keys[5], (Cw,), dtype=jnp.float32)
    b_w = jax.random.normal(keys[6], (Cw,), dtype=jnp.float32)
    out_w = jax.block_until_ready(
        layer_norm(x_w, w_w, b_w, eps=1e-6, data_format="channels_last"))
    ref_w = _ref_layer_norm(x_w, w_w, b_w, 1e-6, "channels_last")
    assert out_w.shape == x_w.shape
    assert jnp.max(jnp.abs(out_w - ref_w)) < 1e-4

    print("KERNEL_OK")
</pallas_src>

<mosaic_0001>
module attributes {stable_mosaic.version = 11 : i64} {
  func.func @_ln_sublane_kernel(%arg0: i32, %arg1: i32, %arg2: memref<1x4x256xf32, #tpu.memory_space<vmem>>, %arg3: memref<4x1xf32, #tpu.memory_space<vmem>>, %arg4: memref<4x1xf32, #tpu.memory_space<vmem>>, %arg5: memref<1x4x256xf32, #tpu.memory_space<vmem>>) attributes {dimension_semantics = [#tpu.dimension_semantics<parallel>, #tpu.dimension_semantics<parallel>], iteration_bounds = array<i64: 2, 1>, scalar_prefetch = 0 : i64, scratch_operands = 0 : i64, tpu.core_type = #tpu.core_type<tc>, window_params = [{transform_indices = @transform_0, window_bounds = array<i64: 1, 4, 256>}, {pipeline_mode = #tpu.pipeline_mode<synchronous>, transform_indices = @transform_1, window_bounds = array<i64: 4, 1>}, {pipeline_mode = #tpu.pipeline_mode<synchronous>, transform_indices = @transform_2, window_bounds = array<i64: 4, 1>}, {transform_indices = @transform_3, window_bounds = array<i64: 1, 4, 256>}]} {
    %c0 = arith.constant 0 : index
    %c0_0 = arith.constant 0 : index
    %c0_1 = arith.constant 0 : index
    %0 = vector.load %arg2[%c0, %c0_0, %c0_1] : memref<1x4x256xf32, #tpu.memory_space<vmem>>, vector<1x4x256xf32>
    %1 = vector.shape_cast %0 : vector<1x4x256xf32> to vector<4x256xf32>
    %cst = arith.constant dense<0.000000e+00> : vector<256xf32>
    %2 = vector.multi_reduction <add>, %1, %cst [0] : vector<4x256xf32> to vector<256xf32>
    %3 = vector.shape_cast %2 : vector<256xf32> to vector<1x256xf32>
    %4 = arith.mulf %1, %1 : vector<4x256xf32>
    %cst_2 = arith.constant dense<0.000000e+00> : vector<256xf32>
    %5 = vector.multi_reduction <add>, %4, %cst_2 [0] : vector<4x256xf32> to vector<256xf32>
    %6 = vector.shape_cast %5 : vector<256xf32> to vector<1x256xf32>
    %cst_3 = arith.constant 2.500000e-01 : f32
    %7 = vector.broadcast %cst_3 : f32 to vector<1x256xf32>
    %8 = arith.mulf %3, %7 : vector<1x256xf32>
    %cst_4 = arith.constant 2.500000e-01 : f32
    %9 = vector.broadcast %cst_4 : f32 to vector<1x256xf32>
    %10 = arith.mulf %6, %9 : vector<1x256xf32>
    %11 = arith.mulf %8, %8 : vector<1x256xf32>
    %12 = arith.subf %10, %11 : vector<1x256xf32>
    %cst_5 = arith.constant 0.000000e+00 : f32
    %13 = vector.broadcast %cst_5 : f32 to vector<1x256xf32>
    %14 = arith.maximumf %12, %13 : vector<1x256xf32>
    %cst_6 = arith.constant 9.99999997E-7 : f32
    %15 = vector.broadcast %cst_6 : f32 to vector<1x256xf32>
    %16 = arith.addf %14, %15 : vector<1x256xf32>
    %17 = math.rsqrt %16 : vector<1x256xf32>
    %c0_7 = arith.constant 0 : index
    %c0_8 = arith.constant 0 : index
    %18 = vector.load %arg3[%c0_7, %c0_8] : memref<4x1xf32, #tpu.memory_space<vmem>>, vector<4x1xf32>
    %c0_9 = arith.constant 0 : index
    %c0_10 = arith.constant 0 : index
    %19 = vector.load %arg4[%c0_9, %c0_10] : memref<4x1xf32, #tpu.memory_space<vmem>>, vector<4x1xf32>
    %20 = vector.broadcast %8 : vector<1x256xf32> to vector<4x256xf32>
    %21 = arith.subf %1, %20 : vector<4x256xf32>
    %22 = vector.broadcast %17 : vector<1x256xf32> to vector<4x256xf32>
    %23 = vector.broadcast %18 : vector<4x1xf32> to vector<4x256xf32>
    %24 = arith.mulf %22, %23 : vector<4x256xf32>
    %25 = arith.mulf %21, %24 : vector<4x256xf32>
    %26 = vector.broadcast %19 : vector<4x1xf32> to vector<4x256xf32>
    %27 = arith.addf %25, %26 : vector<4x256xf32>
    %c0_11 = arith.constant 0 : index
    %c0_12 = arith.constant 0 : index
    %c0_13 = arith.constant 0 : index
    %28 = vector.load %arg5[%c0_11, %c0_12, %c0_13] : memref<1x4x256xf32, #tpu.memory_space<vmem>>, vector<1x4x256xf32>
    %29 = vector.shape_cast %28 : vector<1x4x256xf32> to vector<4x256xf32>
    %30 = vector.shape_cast %27 : vector<4x256xf32> to vector<1x4x256xf32>
    tpu.vector_store %arg5[%c0_11, %c0_12, %c0_13], %30 {strides = array<i32>} : memref<1x4x256xf32, #tpu.memory_space<vmem>>, vector<1x4x256xf32>,
    return
  }
  func.func @transform_0(%arg0: i32, %arg1: i32) -> (i32, i32, i32) {
    %c0_i32 = arith.constant 0 : i32
    %c0_i32_0 = arith.constant 0 : i32
    return %arg0, %c0_i32, %arg1 : i32, i32, i32
  }
  func.func @transform_1(%arg0: i32, %arg1: i32) -> (i32, i32) {
    %c0_i32 = arith.constant 0 : i32
    %c0_i32_0 = arith.constant 0 : i32
    %c0_i32_1 = arith.constant 0 : i32
    return %c0_i32, %c0_i32_0 : i32, i32
  }
  func.func @transform_2(%arg0: i32, %arg1: i32) -> (i32, i32) {
    %c0_i32 = arith.constant 0 : i32
    %c0_i32_0 = arith.constant 0 : i32
    %c0_i32_1 = arith.constant 0 : i32
    return %c0_i32, %c0_i32_0 : i32, i32
  }
  func.func @transform_3(%arg0: i32, %arg1: i32) -> (i32, i32, i32) {
    %c0_i32 = arith.constant 0 : i32
    %c0_i32_0 = arith.constant 0 : i32
    return %arg0, %c0_i32, %arg1 : i32, i32, i32
  }
}

</mosaic_0001>

<llo_original>
// kernel: tpu_custom_call.1
$region0: #{tpu_custom_call.1}
  #allocation0 [shape = 'u32[]', space=smem, size = 0x4, offset = 0x4, fixed_abs, tag = 'smem constant byte address 0x4 - core index']
  #allocation1 [shape = 'u32[72,128]{1,0:T(1,128)}', space=vmem, size = 0x9000, scoped, tag = 'internal scratch']
  %s0 = inlined_call_operand.hbm [shape: f32[2,4,256], index: 0, kind: input, shape index: {}]
  %s1 = inlined_call_operand.vmem [shape: f32[4,1], index: 1, kind: input, shape index: {}]
  %s2 = inlined_call_operand.vmem [shape: f32[4,1], index: 2, kind: input, shape index: {}]
  %s3 = inlined_call_operand.hbm [shape: f32[2,4,256], index: 3, kind: output, shape index: {}]
  %s4 = sld [smem:[#allocation0]]
  $region49: #{tpu_custom_call.1} parent=0
    _
  %s6 = ssub.s32 1, %s4
  %s7 = scalar_select 0, %s6, %s4
  $region1: #{tpu_custom_call.1} parent=0
    #allocation2 [shape = 'u8[8192]{0}', space=vmem, size = 0x2000, scoped, tag = 'input window, operand 0']
    #allocation3 [shape = 's32[2]{0}', space=sflag, size = 0x8, scoped, tag = 'scoped memory for tpu_custom_call.1']
    #allocation4 [shape = 's32[2]{0}', space=sflag, size = 0x8, scoped, tag = 'scoped memory for tpu_custom_call.1']
    #allocation5 [shape = 'u8[8192]{0}', space=vmem, size = 0x2000, scoped, tag = 'output window, operand 0']
    %8 = vsyncpa [#allocation3], 0
    %s9 = scalar_lea.sflag [#allocation3], 1
    %10 = vsyncpa %s9, 0
    %11 = vsyncpa [#allocation4], 0
    %s12 = scalar_lea.sflag [#allocation4], 1
    %13 = vsyncpa %s12, 0
    loop: start=0, step=1, limit=4
    $region2: #{tpu_custom_call.1} parent=1 // loop_pre_header
      _
    $region3: #{tpu_custom_call.1} parent=1 // loop_header
      %s15 = sphi 0, %s19
      %p16 = scmp.ge.s32.totalorder %s15, 4
      %s22 = sphi 0, %s34
      %s23 = sphi 0, %s30
      %s24 = sphi 0, %s22
      %s25 = sphi 0, %s23
      %s26 = sphi 0, %s24
      %s27 = sphi 0, %s25
      %s39 = sphi 0, %s41
      %s42 = sphi 0, %s39
      %s43 = sphi 0, %s42
      %s59 = sphi 0, %s43
      %s63 = sphi 0, %s63
      %s65 = sphi 0, %s63
      %s66 = sphi 0, %s65
      %s80 = sphi 0, %s66
      %s84 = sphi 0, %s84
      %s86 = sphi 0, %s84
      %s87 = sphi 0, %s86
      %s101 = sphi 0, %s87
      %s109 = sphi 0, %s111
      %s112 = sphi 0, %s109
      %s113 = sphi 0, %s112
      %s129 = sphi 0, %s113
    $region4: #{tpu_custom_call.1} parent=1 // loop_header_branch
      %18 = sbr.rel (%p16) target = $region8
    $region5: #{tpu_custom_call.1} parent=1 // loop_body
      %s20 = ssub.s32 %s15, 1
      %s21 = ssub.s32 %s15, 2
      %s28 = sadd.s32 1, %s23
      %p29 = scmp.ge.s32.totalorder %s28, 1
      %s30 = scalar_select %p29, 0, %s28
      %s31 = sadd.s32 1, %s22
      %s32 = scalar_select %p29, %s31, %s22
      %p33 = scmp.ge.s32.totalorder %s32, 2
      %s34 = scalar_select %p33, 0, %s32
      %s35 = ssub.s32 %s22, %s34
      %s36 = ssub.s32 %s23, %s30
      %s37 = sor.u32 %s35, %s36
      %p38 = scmp.eq.s32.totalorder %s37, 0
      %s40 = sadd.s32 %s39, 1
      %s41 = scalar_select %p38, %s39, %s40
      %p44 = pneg %p38
      %p45 = scmp.eq.s32.totalorder %s15, 1
      %p46 = por %p44, %p45
      %p47 = scmp.ne.s32.totalorder %s39, %s42
      %p48 = scmp.eq.s32.totalorder %s15, 0
      %p49 = por %p47, %p48
      %p50 = scmp.ne.s32.totalorder %s39, %s42
      %p51 = scmp.eq.s32.totalorder %s20, 1
      %p52 = por %p50, %p51
      %p53 = scmp.ne.s32.totalorder %s42, %s43
      %p54 = scmp.eq.s32.totalorder %s20, 0
      %p55 = por %p53, %p54
      %p56 = scmp.ne.s32.totalorder %s42, %s43
      %p57 = scmp.eq.s32.totalorder %s21, 1
      %p58 = por %p56, %p57
      %p60 = scmp.ne.s32.totalorder %s43, %s59
      %p61 = scmp.eq.s32.totalorder %s21, 0
      %p62 = por %p60, %p61
      %s64 = sadd.s32 %s63, 1
      %p67 = scmp.eq.s32.totalorder %s15, 1
      %p68 = scmp.ne.s32.totalorder %s63, %s65
      %p69 = scmp.eq.s32.totalorder %s15, 0
      %p70 = por %p68, %p69
      %p71 = scmp.ne.s32.totalorder %s63, %s65
      %p72 = scmp.eq.s32.totalorder %s20, 1
      %p73 = por %p71, %p72
      %p74 = scmp.ne.s32.totalorder %s65, %s66
      %p75 = scmp.eq.s32.totalorder %s20, 0
      %p76 = por %p74, %p75
      %p77 = scmp.ne.s32.totalorder %s65, %s66
      %p78 = scmp.eq.s32.totalorder %s21, 1
      %p79 = por %p77, %p78
      %p81 = scmp.ne.s32.totalorder %s66, %s80
      %p82 = scmp.eq.s32.totalorder %s21, 0
      %p83 = por %p81, %p82
      %s85 = sadd.s32 %s84, 1
      %p88 = scmp.eq.s32.totalorder %s15, 1
      %p89 = scmp.ne.s32.totalorder %s84, %s86
      %p90 = scmp.eq.s32.totalorder %s15, 0
      %p91 = por %p89, %p90
      %p92 = scmp.ne.s32.totalorder %s84, %s86
      %p93 = scmp.eq.s32.totalorder %s20, 1
      %p94 = por %p92, %p93
      %p95 = scmp.ne.s32.totalorder %s86, %s87
      %p96 = scmp.eq.s32.totalorder %s20, 0
      %p97 = por %p95, %p96
      %p98 = scmp.ne.s32.totalorder %s86, %s87
      %p99 = scmp.eq.s32.totalorder %s21, 1
      %p100 = por %p98, %p99
      %p102 = scmp.ne.s32.totalorder %s87, %s101
      %p103 = scmp.eq.s32.totalorder %s21, 0
      %p104 = por %p102, %p103
      %s105 = ssub.s32 %s22, %s34
      %s106 = ssub.s32 %s23, %s30
      %s107 = sor.u32 %s105, %s106
      %p108 = scmp.eq.s32.totalorder %s107, 0
      %s110 = sadd.s32 %s109, 1
      %s111 = scalar_select %p108, %s109, %s110
      %p114 = pneg %p108
      %p115 = scmp.eq.s32.totalorder %s15, 1
      %p116 = por %p114, %p115
      %p117 = scmp.ne.s32.totalorder %s109, %s112
      %p118 = scmp.eq.s32.totalorder %s15, 0
      %p119 = por %p117, %p118
      %p120 = scmp.ne.s32.totalorder %s109, %s112
      %p121 = scmp.eq.s32.totalorder %s20, 1
      %p122 = por %p120, %p121
      %p123 = scmp.ne.s32.totalorder %s112, %s113
      %p124 = scmp.eq.s32.totalorder %s20, 0
      %p125 = por %p123, %p124
      %p126 = scmp.ne.s32.totalorder %s112, %s113
      %p127 = scmp.eq.s32.totalorder %s21, 1
      %p128 = por %p126, %p127
      %p130 = scmp.ne.s32.totalorder %s113, %s129
      %p131 = scmp.eq.s32.totalorder %s21, 0
      %p132 = por %p130, %p131
      %p133 = scmp.le.s32.totalorder 1, %s15
      %p134 = scmp.lt.s32.totalorder %s15, 3
      %p135 = pnand %p133, %p134
      %p136 = pneg %p135
      // Predicated region
      $region9: #{tpu_custom_call.1} parent=5 // pred_check
        _
      $region10: #{tpu_custom_call.1} parent=5 // pred_check_branch
        %138 = sbr.rel (%p135) target = $region12
      $region11: #{tpu_custom_call.1} parent=5 // pred_region
        %s139 = ssub.s32 %s15, 1
        // Predicated region
        $region13: #{tpu_custom_call.1} parent=11 // pred_check
          %p140 = pneg %p76
        $region14: #{tpu_custom_call.1} parent=11 // pred_check_branch
          %142 = sbr.rel (%p140) target = $region16
        $region15: #{tpu_custom_call.1} parent=11 // pred_region
          _
        $region16: #{tpu_custom_call.1} parent=11 // pred_fallthru
          _
        // Predicated region
        $region17: #{tpu_custom_call.1} parent=11 // pred_check
          %p143 = pneg %p97
        $region18: #{tpu_custom_call.1} parent=11 // pred_check_branch
          %145 = sbr.rel (%p143) target = $region20
        $region19: #{tpu_custom_call.1} parent=11 // pred_region
          _
        $region20: #{tpu_custom_call.1} parent=11 // pred_fallthru
          _
      $region12: #{tpu_custom_call.1} parent=5 // pred_fallthru
        _
      %p146 = scmp.lt.s32.totalorder %s15, 2
      // Predicated region
      $region21: #{tpu_custom_call.1} parent=5 // pred_check
        %p147 = pneg %p146
      $region22: #{tpu_custom_call.1} parent=5 // pred_check_branch
        %149 = sbr.rel (%p147) target = $region24
      $region23: #{tpu_custom_call.1} parent=5 // pred_region
        // Predicated region
        $region25: #{tpu_custom_call.1} parent=23 // pred_check
          %p150 = pneg %p49
        $region26: #{tpu_custom_call.1} parent=23 // pred_check_branch
          %152 = sbr.rel (%p150) target = $region28
        $region27: #{tpu_custom_call.1} parent=23 // pred_region
          %s153 = sand.u32 %s39, 1
          %s154 = scalar_lea.sflag [#allocation3], %s153
          %s155 = sand.u32 %s39, 1
          %s156 = smul.addr %s155, 8
          %s157 = scalar_lea.vmem [#allocation2], %s156
          %s158 = smul.u32 2, %s23
          %160 = vsyncadd %s154, 0
          %s161 = smul.addr %s22, 2
          %s162 = sadd.s32 %s158, %s161
          %s163 = smul.addr %s162, 4
          %s164 = scalar_lea.hbm %s0, %s163
          %s166 = sshll.u32 %s164, 4
          %s167 = int_to_ptr.hbm [resolvable:$true] %s166
          %s168 = sshll.u32 %s157, 4
          %s169 = int_to_ptr.vmem [resolvable:$true] %s168
          %171 = dma.hbm_to_vmem [thread:$0]  %s167, 128, %s169, %s154
        $region28: #{tpu_custom_call.1} parent=23 // pred_fallthru
          _
      $region24: #{tpu_custom_call.1} parent=5 // pred_fallthru
        _
      %p172 = scmp.le.s32.totalorder 1, %s15
      %p173 = scmp.lt.s32.totalorder %s15, 3
      %p174 = pnand %p172, %p173
      %p175 = pneg %p174
      // Predicated region
      $region29: #{tpu_custom_call.1} parent=5 // pred_check
        _
      $region30: #{tpu_custom_call.1} parent=5 // pred_check_branch
        %177 = sbr.rel (%p174) target = $region32
      $region31: #{tpu_custom_call.1} parent=5 // pred_region
        %s178 = ssub.s32 %s15, 1
        %s179 = sand.u32 %s42, 1
        %s180 = scalar_lea.sflag [#allocation3], %s179
        %s181 = sand.u32 %s42, 1
        %s182 = smul.addr %s181, 8
        %s183 = scalar_lea.vmem [#allocation2], %s182
        // Predicated region
        $region33: #{tpu_custom_call.1} parent=31 // pred_check
          %p184 = pneg %p55
        $region34: #{tpu_custom_call.1} parent=31 // pred_check_branch
          %186 = sbr.rel (%p184) target = $region36
        $region35: #{tpu_custom_call.1} parent=31 // pred_region
          %188 = dma.done %s180, 128
        $region36: #{tpu_custom_call.1} parent=31 // pred_fallthru
          _
        %s189 = sand.u32 %s42, 1
        %s190 = scalar_lea.sflag [#allocation3], %s189
        %s191 = sand.u32 %s42, 1
        %s192 = smul.addr %s191, 8
        %s193 = scalar_lea.vmem [#allocation2], %s192
        %p194 = pneg %p55
        %p195 = pneg %p52
        %p196 = pneg %p76
        %p197 = pneg %p73
        %p198 = pneg %p97
        %p199 = pneg %p94
        %p200 = pneg %p125
        %p201 = pneg %p122
        %s202 = sand.u32 %s112, 1
        %s203 = scalar_lea.sflag [#allocation4], %s202
        %s204 = sand.u32 %s112, 1
        %s205 = smul.addr %s204, 8
        %s206 = scalar_lea.vmem [#allocation5], %s205
        %s207 = smul.u32 2, %s25
        %s208 = smul.u32 2, %s25
        %v209 = vld [vmem:[%s183] sm:$0xff]
        %211 = vst [vmem:[#allocation1] ss:$2 sm:$0xff] %v209
        %v212 = vld.sshfl [vmem:[#allocation1] sm:$0xff pattern:$0x75316420]
        %v213 = vld.sshfl [vmem:[#allocation1 + $0x8] sm:$0xff pattern:$0x75316420]
        %vm216 = vcmask 1043456
        %v217 = vsel %vm216, %v212, 0.0
        %v218 = vrot.slane %v217, 4
        %v219 = vadd.f32 %v217, %v218
        %v220 = vrot.slane %v219, 2
        %v221 = vadd.f32 %v219, %v220
        %v222 = vrot.slane %v221, 1
        %v223 = vadd.f32 %v221, %v222
        %v224 = vsel %vm216, %v213, 0.0
        %v225 = vrot.slane %v224, 4
        %v226 = vadd.f32 %v224, %v225
        %v227 = vrot.slane %v226, 2
        %v228 = vadd.f32 %v226, %v227
        %v229 = vrot.slane %v228, 1
        %v230 = vadd.f32 %v228, %v229
        %v231 = vmul.f32 %v209, %v209
        %233 = vst [vmem:[#allocation1] ss:$2 sm:$0xff] %v231
        %v234 = vld.sshfl [vmem:[#allocation1] sm:$0xff pattern:$0x75316420]
        %v235 = vld.sshfl [vmem:[#allocation1 + $0x8] sm:$0xff pattern:$0x75316420]
        %v238 = vsel %vm216, %v234, 0.0
        %v239 = vrot.slane %v238, 4
        %v240 = vadd.f32 %v238, %v239
        %v241 = vrot.slane %v240, 2
        %v242 = vadd.f32 %v240, %v241
        %v243 = vrot.slane %v242, 1
        %v244 = vadd.f32 %v242, %v243
        %v245 = vsel %vm216, %v235, 0.0
        %v246 = vrot.slane %v245, 4
        %v247 = vadd.f32 %v245, %v246
        %v248 = vrot.slane %v247, 2
        %v249 = vadd.f32 %v247, %v248
        %v250 = vrot.slane %v249, 1
        %v251 = vadd.f32 %v249, %v250
        %v252 = vmul.f32 %v223, 0.25
        %v253 = vmul.f32 %v230, 0.25
        %v254 = vmul.f32 %v244, 0.25
        %v255 = vmul.f32 %v251, 0.25
        %v256 = vmul.f32 %v252, %v252
        %v257 = vmul.f32 %v253, %v253
        %v258 = vsub.f32 %v254, %v256
        %v259 = vsub.f32 %v255, %v257
        %v260 = vmax.f32 %v258, 0.0
        %v261 = vmax.f32 %v259, 0.0
        %v262 = vadd.f32 %v260, 1e-06
        %v263 = vadd.f32 %v261, 1e-06
        %v264 = vrsqrt.pop %v262
        %v265 = vmul.f32 %v264, %v262
        %v266 = vmul.f32 %v265, %v264
        %v267 = vmul.f32 0.5, %v266
        %v268 = vsub.f32 1.5, %v267
        %v269 = vmul.f32 %v264, %v268
        %vm270 = vweird.f32 %v262
        %vm271 = vweird.f32 %v264
        %vm272 = vmor %vm270, %vm271
        %v273 = vsel %vm272, %v264, %v269
        %v274 = vrsqrt.pop %v263
        %v275 = vmul.f32 %v274, %v263
        %v276 = vmul.f32 %v275, %v274
        %v277 = vmul.f32 0.5, %v276
        %v278 = vsub.f32 1.5, %v277
        %v279 = vmul.f32 %v274, %v278
        %vm280 = vweird.f32 %v263
        %vm281 = vweird.f32 %v274
        %vm282 = vmor %vm280, %vm281
        %v283 = vsel %vm282, %v274, %v279
        %v284 = vld [vmem:[%s1] sm:$0xf]
        %v285 = vld [vmem:[%s2] sm:$0xf]
        %v288 = vrot.slane %v253, 4
        %v289 = vsel %vm216, %v252, %v288
        %v291 = vsub.f32 %v209, %v289
        %293 = vset.pattern.permute.xlu0 0
        %294 = vperm.xlu0 %293, %v284
        %v295 = vpop.permute.xlu0 %294
        %v297 = vmul.f32 %v273, %v295
        %v298 = vmul.f32 %v283, %v295
        %v301 = vrot.slane %v298, 4
        %v302 = vsel %vm216, %v297, %v301
        %v304 = vmul.f32 %v291, %v302
        %306 = vset.pattern.permute.xlu0 0
        %307 = vperm.xlu0 %306, %v285
        %v308 = vpop.permute.xlu0 %307
        %v310 = vunpack.c.l.s4 839922192
        %v311 = vunpack.c.0.s8 %v310
        %v312 = vperm.slane %v308, %v311
        %v314 = vadd.f32 %v304, %v312
        %315 = vst [vmem:[%s206] sm:$0xff] %v314
        %s316 = sand.u32 %s112, 1
        %s317 = scalar_lea.sflag [#allocation4], %s316
        %s318 = sand.u32 %s112, 1
        %s319 = smul.addr %s318, 8
        %s320 = scalar_lea.vmem [#allocation5], %s319
        // Predicated region
        $region37: #{tpu_custom_call.1} parent=31 // pred_check
          %p321 = pneg %p122
        $region38: #{tpu_custom_call.1} parent=31 // pred_check_branch
          %323 = sbr.rel (%p321) target = $region40
        $region39: #{tpu_custom_call.1} parent=31 // pred_region
          %s324 = smul.u32 2, %s25
          %326 = vsyncadd %s317, 0
          %s327 = smul.addr %s24, 2
          %s328 = sadd.s32 %s324, %s327
          %s329 = smul.addr %s328, 4
          %s330 = scalar_lea.hbm %s3, %s329
          %s332 = sshll.u32 %s320, 4
          %s333 = int_to_ptr.vmem [resolvable:$true] %s332
          %s334 = sshll.u32 %s330, 4
          %s335 = int_to_ptr.hbm [resolvable:$true] %s334
          %337 = dma.vmem_to_hbm [thread:$0]  %s333, 128, %s335, %s317
        $region40: #{tpu_custom_call.1} parent=31 // pred_fallthru
          _
      $region32: #{tpu_custom_call.1} parent=5 // pred_fallthru
        _
      %p338 = scmp.le.s32.totalorder 2, %s15
      // Predicated region
      $region41: #{tpu_custom_call.1} parent=5 // pred_check
        %p339 = pneg %p338
      $region42: #{tpu_custom_call.1} parent=5 // pred_check_branch
        %341 = sbr.rel (%p339) target = $region44
      $region43: #{tpu_custom_call.1} parent=5 // pred_region
        %s342 = ssub.s32 %s15, 2
        // Predicated region
        $region45: #{tpu_custom_call.1} parent=43 // pred_check
          %p343 = pneg %p128
        $region46: #{tpu_custom_call.1} parent=43 // pred_check_branch
          %345 = sbr.rel (%p343) target = $region48
        $region47: #{tpu_custom_call.1} parent=43 // pred_region
          %s346 = sand.u32 %s113, 1
          %s347 = scalar_lea.sflag [#allocation4], %s346
          %s348 = sand.u32 %s113, 1
          %s349 = smul.addr %s348, 8
          %s350 = scalar_lea.vmem [#allocation5], %s349
          %352 = dma.done %s347, 128
        $region48: #{tpu_custom_call.1} parent=43 // pred_fallthru
          _
      $region44: #{tpu_custom_call.1} parent=5 // pred_fallthru
        _
    $region6: #{tpu_custom_call.1} parent=1 // loop_footer
      %s19 = sadd.s32 1, %s15
    $region7: #{tpu_custom_call.1} parent=1 // loop_footer_branch
      %14 = sbr.rel target = $region3
    $region8: #{tpu_custom_call.1} parent=1 // loop_exit
      _
    %353 = vsyncpa [#allocation3], 1
    %s354 = scalar_lea.sflag [#allocation3], 1
    %355 = vsyncpa %s354, 1
    %356 = vsyncpa [#allocation4], 1
    %s357 = scalar_lea.sflag [#allocation4], 1
    %358 = vsyncpa %s357, 1

</llo_original>
